<compile_context>
chip_gen: v5e
topology: v5e:2x2
jax: 0.10.0
libtpu: 0.0.40
codegen_flags: <defaults>
</compile_context>

<pallas_src>
import functools

import jax
import jax.numpy as jnp
from jax.experimental import pallas as pl
from jax.experimental.pallas import tpu as pltpu


_LANES = 128                     # all MXU operand widths folded/padded to 128 lanes
_TM_TARGET = 2048                # row-tile target (a few MiB/step)
_VMEM_LIMIT = 48 * 1024 * 1024   # headroom on v7x (64 MiB physical); fine on v5e/v6e


def _round_up(x, m):
    return ((x + m - 1) // m) * m


def _gelu_tanh(x):
    # TODO(synk): torch.nn.GELU defaults to the exact erf form; the tanh
    # approximation (max abs err ~1e-3) is used to stay on guaranteed EUP ops.
    c = jnp.float32(0.7978845608028654)  # sqrt(2/pi)
    return 0.5 * x * (1.0 + jnp.tanh(c * (x + 0.044715 * x * x * x)))


# ----------------------------- Pallas kernel --------------------------------


def _fused_kernel(xll_ref, xgt_ref, w1_ref, b1_ref, w2_ref, w3_ref,
                  p1_ref, p2_ref, p3_ref):
    """Fully fused stages 1..3 for BOTH images on one row tile.

    Stage 1 is evaluated for all four stage-1 pixels of every stage-2 output
    pixel at once (block-diagonal w1 -> 128 lanes), so the GELU'ed difference
    d1 is already in stage-2 patch order.  Stages 2/3 are linear (biases
    cancel in the difference) and run on the resident tile; only three
    (1, 1, 128) per-tile MSE partial sums leave VMEM.
    """
    w1 = w1_ref[...]
    b1 = b1_ref[...]
    # Two separate dots (not one stacked dot): an in-kernel concat would copy
    # 2*tm*48 bf16 through VMEM, which costs more than re-pushing a 48-row RHS.
    z_ll = jnp.dot(xll_ref[...], w1, preferred_element_type=jnp.float32) + b1
    z_gt = jnp.dot(xgt_ref[...], w1, preferred_element_type=jnp.float32) + b1
    d1 = _gelu_tanh(z_ll) - _gelu_tanh(z_gt)                    # (tm, 128) f32
    n = d1.shape[-1]
    p1_ref[...] = jnp.sum(d1 * d1, axis=0, keepdims=True).reshape(1, 1, n)

    d2 = jnp.dot(d1.astype(jnp.bfloat16), w2_ref[...],
                 preferred_element_type=jnp.float32)            # (tm, 128) f32
    p2_ref[...] = jnp.sum(d2 * d2, axis=0, keepdims=True).reshape(1, 1, n)

    d3 = jnp.dot(d2.astype(jnp.bfloat16), w3_ref[...],
                 preferred_element_type=jnp.float32)            # (tm, 128) f32
    p3_ref[...] = jnp.sum(d3 * d3, axis=0, keepdims=True).reshape(1, 1, n)


def fused_perceptual_partials(xll_p, xgt_p, w1, b1, w2, w3, tm):
    """One fused pallas_call over row tiles of the 4x4-patchified inputs."""
    M, K = xll_p.shape            # (M2_padded, 48)
    N = w1.shape[1]               # 128
    nt = M // tm
    cost = pl.CostEstimate(
        flops=2 * M * (2 * K * N + N * N + N * N),
        transcendentals=2 * M * N,
        bytes_accessed=(2 * M * K) * 2 + (K * N + 2 * N * N) * 2 + N * 4
                       + 3 * nt * N * 4,
    )
    return pl.pallas_call(
        _fused_kernel,
        grid=(nt,),
        in_specs=[
            pl.BlockSpec((tm, K), lambda i: (i, 0)),
            pl.BlockSpec((tm, K), lambda i: (i, 0)),
            pl.BlockSpec((K, N), lambda i: (0, 0)),
            pl.BlockSpec((1, N), lambda i: (0, 0)),
            pl.BlockSpec((N, N), lambda i: (0, 0)),
            pl.BlockSpec((N, N), lambda i: (0, 0)),
        ],
        out_specs=(
            pl.BlockSpec((1, 1, N), lambda i: (i, 0, 0)),
            pl.BlockSpec((1, 1, N), lambda i: (i, 0, 0)),
            pl.BlockSpec((1, 1, N), lambda i: (i, 0, 0)),
        ),
        out_shape=(
            jax.ShapeDtypeStruct((nt, 1, N), jnp.float32),
            jax.ShapeDtypeStruct((nt, 1, N), jnp.float32),
            jax.ShapeDtypeStruct((nt, 1, N), jnp.float32),
        ),
        compiler_params=pltpu.CompilerParams(
            dimension_semantics=("parallel",),
            vmem_limit_bytes=_VMEM_LIMIT,
        ),
        cost_estimate=cost,
    )(xll_p, xgt_p, w1, b1, w2, w3)


# ------------------------------ JAX glue ------------------------------------


def _patchify44(x_nchw):
    """NCHW image -> (B*H2*W2, 48) 4x4/stride-4 patches in stage-2 pixel order.

    Per stage-2 pixel, the 48 values are laid out as
      [stage-1 position (dy,dx) major] x [stage-1 2x2 patch (dy1,dx1)] x [cin],
    matching the block-diagonal stage-1 weight and the (4*c1, c2) stage-2 weight.
    """
    B, C, H, W = x_nchw.shape
    H2, W2 = H // 4, W // 4
    x = x_nchw.transpose(0, 2, 3, 1)                      # NHWC
    x = x.reshape(B, H2, 2, 2, W2, 2, 2, C)               # (B,h2,dy,dy1,w2,dx,dx1,C)
    x = x.transpose(0, 1, 4, 2, 5, 3, 6, 7)               # (B,h2,w2,dy,dx,dy1,dx1,C)
    return x.reshape(B * H2 * W2, 4 * 4 * C), (B, H2, W2)


def init_params(key, c_in=3, c1=32, c2=64, c3=64):
    """Deterministic synthetic weights mimicking the hooked SAM encoder layers.

    TODO(synk): the real module loads the frozen MobileSAM (vit_t) checkpoint;
    unavailable here, so the three hooked layers are structural stand-ins.
    """
    ks = jax.random.split(key, 9)
    f32 = jnp.float32
    return {
        # stage 1: 2x2 stride-2 Conv2d_BN + GELU   (analog of ... GELU_3)
        "w1": 0.10 * jax.random.normal(ks[0], (c_in * 4, c1), f32),
        "s1": 1.0 + 0.01 * jax.random.normal(ks[1], (1, c1), f32),
        "b1": 0.01 * jax.random.normal(ks[2], (1, c1), f32),
        # stage 2: 2x2 stride-2 Conv2d_BN          (analog of Conv2d_BN_33)
        "w2": 0.05 * jax.random.normal(ks[3], (c1 * 4, c2), f32),
        "s2": 1.0 + 0.01 * jax.random.normal(ks[4], (1, c2), f32),
        "b2": 0.01 * jax.random.normal(ks[5], (1, c2), f32),
        # stage 3: 1x1 Conv2d_BN                   (analog of Conv2d_BN_57)
        "w3": 0.05 * jax.random.normal(ks[6], (c2, c3), f32),
        "s3": 1.0 + 0.01 * jax.random.normal(ks[7], (1, c3), f32),
        "b3": 0.01 * jax.random.normal(ks[8], (1, c3), f32),
    }


def fold_params(p, pad_n=_LANES):
    """One-time prep for the frozen encoder.

    * Fold ImageNet normalization and BN scales into the conv weights.
    * Fold the 4 stage-1 positions of a stage-2 pixel into a block-diagonal
      (48, 4*c1) stage-1 weight, so the stage-1 output is lane-dense (128) and
      already in stage-2 patch order (K2 = 4*c1 = 128 — no padded K blow-up).
    * Zero-pad stage-2/3 output channels to 128 lanes (padded columns are
      exactly zero, contributing nothing to the MSE sums).
    * Stage-2/3 biases are dropped: they cancel in the feature difference.
    Returns (bf16 kernel params, f32 reference params, real channel counts).
    """
    c_in = 3
    c1 = p["w1"].shape[1]
    c2 = p["w2"].shape[1]
    c3 = p["w3"].shape[1]
    assert 4 * c1 == pad_n, "stage-2 contraction dim must be exactly 128 lanes"

    mean = jnp.array([0.485, 0.456, 0.406], jnp.float32)
    std = jnp.array([0.229, 0.224, 0.225], jnp.float32)
    inv_std12 = jnp.tile(1.0 / std, 4)                    # per K1 row (dy1,dx1,cin)
    mean12 = jnp.tile(mean, 4)

    # stage 1: BN scale + input normalization folded into (12, c1) weight/bias.
    w1s = p["w1"] * p["s1"]                               # (12, c1)
    w1f = w1s * inv_std12[:, None]
    b1f = p["b1"] - (mean12 * inv_std12)[None, :] @ w1s   # (1, c1)

    # block-diagonal over the 4 stage-1 positions of each stage-2 pixel.
    w1_big = jnp.zeros((4 * 4 * c_in, 4 * c1), jnp.float32)
    for pos in range(4):
        w1_big = w1_big.at[pos * 12:(pos + 1) * 12, pos * c1:(pos + 1) * c1].set(w1f)
    b1_big = jnp.tile(b1f, (1, 4))                        # (1, 128)

    # stage 2: (4*c1, c2) -> (128, 128); stage 3: (c2, c3) -> (128, 128).
    w2p = jnp.zeros((4 * c1, pad_n), jnp.float32).at[:, :c2].set(p["w2"] * p["s2"])
    w3p = jnp.zeros((pad_n, pad_n), jnp.float32).at[:c2, :c3].set(p["w3"] * p["s3"])

    fparams = {"w1": w1_big, "b1": b1_big, "w2": w2p, "w3": w3p}
    kparams = {"w1": w1_big.astype(jnp.bfloat16), "b1": b1_big,
               "w2": w2p.astype(jnp.bfloat16), "w3": w3p.astype(jnp.bfloat16)}
    return kparams, fparams, (c1, c2, c3)


@functools.partial(jax.jit, static_argnames=("real_channels",))
def sam_perceptual_loss(low_light, gt, kparams, real_channels):
    """Forward of SAMPerpetualLoss: mean over 3 hooked layers of MSE(feat_ll, feat_gt)."""
    c1, c2, c3 = real_channels
    B, C, H, W = low_light.shape
    assert H % 4 == 0 and W % 4 == 0

    # TODO(synk): real SAM preprocessing resizes the longest side to 1024
    # (ResizeLongestSide) and pads; skipped at toy scale. Mean/std normalization
    # is folded into the stage-1 weights, so only a layout pass remains here.
    # TODO(synk): the 4x4 patchify (layout-only pass over the 3-channel input)
    # could be folded into the kernel's in_spec if input traffic ever dominates.
    xll_p, (Bp, H2, W2) = _patchify44(low_light)
    xgt_p, _ = _patchify44(gt)
    M2 = B * H2 * W2

    tm = min(_TM_TARGET, _round_up(M2, 8))
    M2p = _round_up(M2, tm)
    pad = M2p - M2
    # Padded rows are zero for BOTH images -> every partial contribution is 0.
    xll_p = jnp.pad(xll_p, ((0, pad), (0, 0))).astype(jnp.bfloat16)
    xgt_p = jnp.pad(xgt_p, ((0, pad), (0, 0))).astype(jnp.bfloat16)

    p1, p2, p3 = fused_perceptual_partials(
        xll_p, xgt_p, kparams["w1"], kparams["b1"], kparams["w2"], kparams["w3"], tm)

    # Divisors use REAL (unpadded) element counts; stage-1 covers all 4*c1
    # folded channels (every stage-1 pixel appears exactly once).
    mse1 = jnp.sum(p1) / jnp.float32(M2 * 4 * c1)
    mse2 = jnp.sum(p2) / jnp.float32(M2 * c2)
    mse3 = jnp.sum(p3) / jnp.float32(M2 * c3)
    return (mse1 + mse2 + mse3) / jnp.float32(3.0)


def reference_loss(low_light, gt, fparams, real_channels):
    """Pure-JAX f32 reference of the same synthetic encoder + loss."""
    c1, c2, c3 = real_channels
    xll_p, (B, H2, W2) = _patchify44(low_light)
    xgt_p, _ = _patchify44(gt)
    M2 = B * H2 * W2
    d1 = (_gelu_tanh(xll_p @ fparams["w1"] + fparams["b1"])
          - _gelu_tanh(xgt_p @ fparams["w1"] + fparams["b1"]))
    d2 = d1 @ fparams["w2"]
    d3 = d2 @ fparams["w3"]
    mse1 = jnp.sum(d1 * d1) / (M2 * 4 * c1)
    mse2 = jnp.sum(d2 * d2) / (M2 * c2)
    mse3 = jnp.sum(d3 * d3) / (M2 * c3)
    return (mse1 + mse2 + mse3) / 3.0


# --------------------------------- main --------------------------------------

if __name__ == "__main__":
    key = jax.random.PRNGKey(0)
    k_param, k_ll, k_gt = jax.random.split(key, 3)

    params = init_params(k_param)
    kparams, fparams, real_channels = fold_params(params)

    # PyTorch-style NCHW image batches (small toy shapes).
    low_light = jax.random.uniform(k_ll, (2, 3, 16, 16), jnp.float32)
    gt = jax.random.uniform(k_gt, (2, 3, 16, 16), jnp.float32)

    loss = sam_perceptual_loss(low_light, gt, kparams, real_channels=real_channels)
    loss = jax.block_until_ready(loss)

    ref = reference_loss(low_light, gt, fparams, real_channels)
    assert loss.shape == () and bool(jnp.isfinite(loss))
    assert abs(float(loss) - float(ref)) <= 0.05 * abs(float(ref)) + 1e-6, (loss, ref)
    print("KERNEL_OK")
</pallas_src>

<mosaic_0001>
module attributes {stable_mosaic.version = 11 : i64} {
  func.func @_fused_kernel(%arg0: i32, %arg1: memref<32x48xbf16, #tpu.memory_space<vmem>>, %arg2: memref<32x48xbf16, #tpu.memory_space<vmem>>, %arg3: memref<48x128xbf16, #tpu.memory_space<vmem>>, %arg4: memref<1x128xf32, #tpu.memory_space<vmem>>, %arg5: memref<128x128xbf16, #tpu.memory_space<vmem>>, %arg6: memref<128x128xbf16, #tpu.memory_space<vmem>>, %arg7: memref<1x1x128xf32, #tpu.memory_space<vmem>>, %arg8: memref<1x1x128xf32, #tpu.memory_space<vmem>>, %arg9: memref<1x1x128xf32, #tpu.memory_space<vmem>>) attributes {dimension_semantics = [#tpu.dimension_semantics<parallel>], iteration_bounds = array<i64: 1>, scalar_prefetch = 0 : i64, scratch_operands = 0 : i64, tpu.core_type = #tpu.core_type<tc>, window_params = [{transform_indices = @transform_0, window_bounds = array<i64: 32, 48>}, {transform_indices = @transform_1, window_bounds = array<i64: 32, 48>}, {pipeline_mode = #tpu.pipeline_mode<synchronous>, transform_indices = @transform_2, window_bounds = array<i64: 48, 128>}, {pipeline_mode = #tpu.pipeline_mode<synchronous>, transform_indices = @transform_3, window_bounds = array<i64: 1, 128>}, {pipeline_mode = #tpu.pipeline_mode<synchronous>, transform_indices = @transform_4, window_bounds = array<i64: 128, 128>}, {pipeline_mode = #tpu.pipeline_mode<synchronous>, transform_indices = @transform_5, window_bounds = array<i64: 128, 128>}, {transform_indices = @transform_6, window_bounds = array<i64: 1, 1, 128>}, {transform_indices = @transform_7, window_bounds = array<i64: 1, 1, 128>}, {transform_indices = @transform_8, window_bounds = array<i64: 1, 1, 128>}]} {
    %c0 = arith.constant 0 : index
    %c0_0 = arith.constant 0 : index
    %0 = vector.load %arg3[%c0, %c0_0] : memref<48x128xbf16, #tpu.memory_space<vmem>>, vector<48x128xbf16>
    %c0_1 = arith.constant 0 : index
    %c0_2 = arith.constant 0 : index
    %1 = vector.load %arg4[%c0_1, %c0_2] : memref<1x128xf32, #tpu.memory_space<vmem>>, vector<1x128xf32>
    %c0_3 = arith.constant 0 : index
    %c0_4 = arith.constant 0 : index
    %2 = vector.load %arg1[%c0_3, %c0_4] : memref<32x48xbf16, #tpu.memory_space<vmem>>, vector<32x48xbf16>
    %cst = arith.constant dense<0.000000e+00> : vector<32x128xf32>
    %3 = tpu.matmul %2, %0, %cst {dimension_numbers = #tpu.dot_dimension_numbers<[1], [0], [0], [1], [0, 0, 1, 1], [], []>} : vector<32x48xbf16>, vector<48x128xbf16>, vector<32x128xf32> -> vector<32x128xf32>
    %4 = vector.broadcast %1 : vector<1x128xf32> to vector<32x128xf32>
    %5 = arith.addf %3, %4 : vector<32x128xf32>
    %c0_5 = arith.constant 0 : index
    %c0_6 = arith.constant 0 : index
    %6 = vector.load %arg2[%c0_5, %c0_6] : memref<32x48xbf16, #tpu.memory_space<vmem>>, vector<32x48xbf16>
    %cst_7 = arith.constant dense<0.000000e+00> : vector<32x128xf32>
    %7 = tpu.matmul %6, %0, %cst_7 {dimension_numbers = #tpu.dot_dimension_numbers<[1], [0], [0], [1], [0, 0, 1, 1], [], []>} : vector<32x48xbf16>, vector<48x128xbf16>, vector<32x128xf32> -> vector<32x128xf32>
    %8 = vector.broadcast %1 : vector<1x128xf32> to vector<32x128xf32>
    %9 = arith.addf %7, %8 : vector<32x128xf32>
    %cst_8 = arith.constant 5.000000e-01 : f32
    %10 = vector.broadcast %cst_8 : f32 to vector<32x128xf32>
    %11 = arith.mulf %10, %5 : vector<32x128xf32>
    %cst_9 = arith.constant 4.471500e-02 : f32
    %12 = vector.broadcast %cst_9 : f32 to vector<32x128xf32>
    %13 = arith.mulf %12, %5 : vector<32x128xf32>
    %14 = arith.mulf %13, %5 : vector<32x128xf32>
    %15 = arith.mulf %14, %5 : vector<32x128xf32>
    %16 = arith.addf %5, %15 : vector<32x128xf32>
    %cst_10 = arith.constant 0.797884583 : f32
    %17 = vector.broadcast %cst_10 : f32 to vector<32x128xf32>
    %18 = arith.mulf %17, %16 : vector<32x128xf32>
    %19 = math.tanh %18 : vector<32x128xf32>
    %cst_11 = arith.constant 1.000000e+00 : f32
    %20 = vector.broadcast %cst_11 : f32 to vector<32x128xf32>
    %21 = arith.addf %20, %19 : vector<32x128xf32>
    %22 = arith.mulf %11, %21 : vector<32x128xf32>
    %cst_12 = arith.constant 5.000000e-01 : f32
    %23 = vector.broadcast %cst_12 : f32 to vector<32x128xf32>
    %24 = arith.mulf %23, %9 : vector<32x128xf32>
    %cst_13 = arith.constant 4.471500e-02 : f32
    %25 = vector.broadcast %cst_13 : f32 to vector<32x128xf32>
    %26 = arith.mulf %25, %9 : vector<32x128xf32>
    %27 = arith.mulf %26, %9 : vector<32x128xf32>
    %28 = arith.mulf %27, %9 : vector<32x128xf32>
    %29 = arith.addf %9, %28 : vector<32x128xf32>
    %cst_14 = arith.constant 0.797884583 : f32
    %30 = vector.broadcast %cst_14 : f32 to vector<32x128xf32>
    %31 = arith.mulf %30, %29 : vector<32x128xf32>
    %32 = math.tanh %31 : vector<32x128xf32>
    %cst_15 = arith.constant 1.000000e+00 : f32
    %33 = vector.broadcast %cst_15 : f32 to vector<32x128xf32>
    %34 = arith.addf %33, %32 : vector<32x128xf32>
    %35 = arith.mulf %24, %34 : vector<32x128xf32>
    %36 = arith.subf %22, %35 : vector<32x128xf32>
    %37 = arith.mulf %36, %36 : vector<32x128xf32>
    %cst_16 = arith.constant dense<0.000000e+00> : vector<128xf32>
    %38 = vector.multi_reduction <add>, %37, %cst_16 [0] : vector<32x128xf32> to vector<128xf32>
    %39 = vector.shape_cast %38 : vector<128xf32> to vector<1x128xf32>
    %40 = vector.shape_cast %39 : vector<1x128xf32> to vector<1x1x128xf32>
    %c0_17 = arith.constant 0 : index
    %c0_18 = arith.constant 0 : index
    %c0_19 = arith.constant 0 : index
    %41 = vector.load %arg7[%c0_17, %c0_18, %c0_19] : memref<1x1x128xf32, #tpu.memory_space<vmem>>, vector<1x1x128xf32>
    tpu.vector_store %arg7[%c0_17, %c0_18, %c0_19], %40 {strides = array<i32>} : memref<1x1x128xf32, #tpu.memory_space<vmem>>, vector<1x1x128xf32>,
    %42 = arith.truncf %36 : vector<32x128xf32> to vector<32x128xbf16>
    %c0_20 = arith.constant 0 : index
    %c0_21 = arith.constant 0 : index
    %43 = vector.load %arg5[%c0_20, %c0_21] : memref<128x128xbf16, #tpu.memory_space<vmem>>, vector<128x128xbf16>
    %cst_22 = arith.constant dense<0.000000e+00> : vector<32x128xf32>
    %44 = tpu.matmul %42, %43, %cst_22 {dimension_numbers = #tpu.dot_dimension_numbers<[1], [0], [0], [1], [0, 0, 1, 1], [], []>} : vector<32x128xbf16>, vector<128x128xbf16>, vector<32x128xf32> -> vector<32x128xf32>
    %45 = arith.mulf %44, %44 : vector<32x128xf32>
    %cst_23 = arith.constant dense<0.000000e+00> : vector<128xf32>
    %46 = vector.multi_reduction <add>, %45, %cst_23 [0] : vector<32x128xf32> to vector<128xf32>
    %47 = vector.shape_cast %46 : vector<128xf32> to vector<1x128xf32>
    %48 = vector.shape_cast %47 : vector<1x128xf32> to vector<1x1x128xf32>
    %c0_24 = arith.constant 0 : index
    %c0_25 = arith.constant 0 : index
    %c0_26 = arith.constant 0 : index
    %49 = vector.load %arg8[%c0_24, %c0_25, %c0_26] : memref<1x1x128xf32, #tpu.memory_space<vmem>>, vector<1x1x128xf32>
    tpu.vector_store %arg8[%c0_24, %c0_25, %c0_26], %48 {strides = array<i32>} : memref<1x1x128xf32, #tpu.memory_space<vmem>>, vector<1x1x128xf32>,
    %50 = arith.truncf %44 : vector<32x128xf32> to vector<32x128xbf16>
    %c0_27 = arith.constant 0 : index
    %c0_28 = arith.constant 0 : index
    %51 = vector.load %arg6[%c0_27, %c0_28] : memref<128x128xbf16, #tpu.memory_space<vmem>>, vector<128x128xbf16>
    %cst_29 = arith.constant dense<0.000000e+00> : vector<32x128xf32>
    %52 = tpu.matmul %50, %51, %cst_29 {dimension_numbers = #tpu.dot_dimension_numbers<[1], [0], [0], [1], [0, 0, 1, 1], [], []>} : vector<32x128xbf16>, vector<128x128xbf16>, vector<32x128xf32> -> vector<32x128xf32>
    %53 = arith.mulf %52, %52 : vector<32x128xf32>
    %cst_30 = arith.constant dense<0.000000e+00> : vector<128xf32>
    %54 = vector.multi_reduction <add>, %53, %cst_30 [0] : vector<32x128xf32> to vector<128xf32>
    %55 = vector.shape_cast %54 : vector<128xf32> to vector<1x128xf32>
    %56 = vector.shape_cast %55 : vector<1x128xf32> to vector<1x1x128xf32>
    %c0_31 = arith.constant 0 : index
    %c0_32 = arith.constant 0 : index
    %c0_33 = arith.constant 0 : index
    %57 = vector.load %arg9[%c0_31, %c0_32, %c0_33] : memref<1x1x128xf32, #tpu.memory_space<vmem>>, vector<1x1x128xf32>
    tpu.vector_store %arg9[%c0_31, %c0_32, %c0_33], %56 {strides = array<i32>} : memref<1x1x128xf32, #tpu.memory_space<vmem>>, vector<1x1x128xf32>,
    return
  }
  func.func @transform_0(%arg0: i32) -> (i32, i32) {
    %c0_i32 = arith.constant 0 : i32
    %c0_i32_0 = arith.constant 0 : i32
    return %arg0, %c0_i32 : i32, i32
  }
  func.func @transform_1(%arg0: i32) -> (i32, i32) {
    %c0_i32 = arith.constant 0 : i32
    %c0_i32_0 = arith.constant 0 : i32
    return %arg0, %c0_i32 : i32, i32
  }
  func.func @transform_2(%arg0: i32) -> (i32, i32) {
    %c0_i32 = arith.constant 0 : i32
    %c0_i32_0 = arith.constant 0 : i32
    %c0_i32_1 = arith.constant 0 : i32
    return %c0_i32, %c0_i32_0 : i32, i32
  }
  func.func @transform_3(%arg0: i32) -> (i32, i32) {
    %c0_i32 = arith.constant 0 : i32
    %c0_i32_0 = arith.constant 0 : i32
    %c0_i32_1 = arith.constant 0 : i32
    return %c0_i32, %c0_i32_0 : i32, i32
  }
  func.func @transform_4(%arg0: i32) -> (i32, i32) {
    %c0_i32 = arith.constant 0 : i32
    %c0_i32_0 = arith.constant 0 : i32
    %c0_i32_1 = arith.constant 0 : i32
    return %c0_i32, %c0_i32_0 : i32, i32
  }
  func.func @transform_5(%arg0: i32) -> (i32, i32) {
    %c0_i32 = arith.constant 0 : i32
    %c0_i32_0 = arith.constant 0 : i32
    %c0_i32_1 = arith.constant 0 : i32
    return %c0_i32, %c0_i32_0 : i32, i32
  }
  func.func @transform_6(%arg0: i32) -> (i32, i32, i32) {
    %c0_i32 = arith.constant 0 : i32
    %c0_i32_0 = arith.constant 0 : i32
    %c0_i32_1 = arith.constant 0 : i32
    return %arg0, %c0_i32, %c0_i32_0 : i32, i32, i32
  }
  func.func @transform_7(%arg0: i32) -> (i32, i32, i32) {
    %c0_i32 = arith.constant 0 : i32
    %c0_i32_0 = arith.constant 0 : i32
    %c0_i32_1 = arith.constant 0 : i32
    return %arg0, %c0_i32, %c0_i32_0 : i32, i32, i32
  }
  func.func @transform_8(%arg0: i32) -> (i32, i32, i32) {
    %c0_i32 = arith.constant 0 : i32
    %c0_i32_0 = arith.constant 0 : i32
    %c0_i32_1 = arith.constant 0 : i32
    return %arg0, %c0_i32, %c0_i32_0 : i32, i32, i32
  }
}

</mosaic_0001>

<llo_original>
// kernel: sam_perceptual_loss.1
$region0: #{sam_perceptual_loss.1}
  #allocation0 [shape = 'u32[]', space=smem, size = 0x4, offset = 0x4, fixed_abs, tag = 'smem constant byte address 0x4 - core index']
  #allocation1 [shape = 'u32[72,128]{1,0:T(1,128)}', space=vmem, size = 0x9000, scoped, tag = 'internal scratch']
  %s0 = inlined_call_operand.vmem [shape: bf16[32,48], index: 0, kind: input, shape index: {}]
  %s1 = inlined_call_operand.vmem [shape: bf16[32,48], index: 1, kind: input, shape index: {}]
  %s2 = inlined_call_operand.vmem [shape: bf16[48,128], index: 2, kind: input, shape index: {}]
  %s3 = inlined_call_operand.vmem [shape: f32[1,128], index: 3, kind: input, shape index: {}]
  %s4 = inlined_call_operand.vmem [shape: bf16[128,128], index: 4, kind: input, shape index: {}]
  %s5 = inlined_call_operand.vmem [shape: bf16[128,128], index: 5, kind: input, shape index: {}]
  %s6 = inlined_call_operand.vmem [shape: f32[1,1,128], index: 6, kind: output, shape index: {0}]
  %s7 = inlined_call_operand.vmem [shape: f32[1,1,128], index: 7, kind: output, shape index: {1}]
  %s8 = inlined_call_operand.vmem [shape: f32[1,1,128], index: 8, kind: output, shape index: {2}]
  %9 = xla_tuple %s6, %s7, %s8
  %s10 = sld [smem:[#allocation0]]
  $region50: #{sam_perceptual_loss.1} parent=0
    _
  %s12 = ssub.s32 1, %s10
  %s13 = scalar_select 0, %s12, %s10
  // Predicated region
  $region2: #{sam_perceptual_loss.1} parent=0 // pred_check
    _
  $region3: #{sam_perceptual_loss.1} parent=0 // pred_check_branch
    %15 = sbr.rel (0) target = $region5
  $region4: #{sam_perceptual_loss.1} parent=0 // pred_region
    _
  $region5: #{sam_perceptual_loss.1} parent=0 // pred_fallthru
    _
  // Predicated region
  $region6: #{sam_perceptual_loss.1} parent=0 // pred_check
    _
  $region7: #{sam_perceptual_loss.1} parent=0 // pred_check_branch
    %17 = sbr.rel (0) target = $region9
  $region8: #{sam_perceptual_loss.1} parent=0 // pred_region
    _
  $region9: #{sam_perceptual_loss.1} parent=0 // pred_fallthru
    _
  // Predicated region
  $region10: #{sam_perceptual_loss.1} parent=0 // pred_check
    _
  $region11: #{sam_perceptual_loss.1} parent=0 // pred_check_branch
    %19 = sbr.rel (0) target = $region13
  $region12: #{sam_perceptual_loss.1} parent=0 // pred_region
    _
  $region13: #{sam_perceptual_loss.1} parent=0 // pred_fallthru
    _
  // Predicated region
  $region14: #{sam_perceptual_loss.1} parent=0 // pred_check
    _
  $region15: #{sam_perceptual_loss.1} parent=0 // pred_check_branch
    %21 = sbr.rel (0) target = $region17
  $region16: #{sam_perceptual_loss.1} parent=0 // pred_region
    _
  $region17: #{sam_perceptual_loss.1} parent=0 // pred_fallthru
    _
  // Predicated region
  $region18: #{sam_perceptual_loss.1} parent=0 // pred_check
    _
  $region19: #{sam_perceptual_loss.1} parent=0 // pred_check_branch
    %23 = sbr.rel (0) target = $region21
  $region20: #{sam_perceptual_loss.1} parent=0 // pred_region
    _
  $region21: #{sam_perceptual_loss.1} parent=0 // pred_fallthru
    _
  // Predicated region
  $region22: #{sam_perceptual_loss.1} parent=0 // pred_check
    _
  $region23: #{sam_perceptual_loss.1} parent=0 // pred_check_branch
    %25 = sbr.rel (0) target = $region25
  $region24: #{sam_perceptual_loss.1} parent=0 // pred_region
    _
  $region25: #{sam_perceptual_loss.1} parent=0 // pred_fallthru
    _
  %v27 = vld [vmem:[%s2] sm:$0xf]
  %v28 = vld [vmem:[%s2 + $0x4] sm:$0xf]
  %v29 = vld [vmem:[%s2 + $0x8] sm:$0xf]
  %v30 = vld [vmem:[%s2 + $0xc] sm:$0xf]
  %v31 = vld [vmem:[%s2 + $0x10] sm:$0xf]
  %v32 = vld [vmem:[%s2 + $0x14] sm:$0xf]
  %v33 = vld [vmem:[%s3] sm:$0x1]
  %v34 = vld [vmem:[%s0] sm:$0xf]
  %v35 = vld [vmem:[%s0 + $0x4] sm:$0xf]
  %v36 = vld [vmem:[%s0 + $0x8] sm:$0xf]
  %v37 = vld [vmem:[%s0 + $0xc] sm:$0xf]
  %v39 = vperm.slane %v33, 0
  %v45 = vunpack.c.l.b16 %v34
  %v46 = vunpack.c.l.b16 %v35
  %v47 = vunpack.c.l.b16 %v36
  %v48 = vunpack.c.l.b16 %v37
  %v49 = vpack.c.b16 %v46, %v45
  %v50 = vpack.c.b16 %v48, %v47
  %v57 = vunpack.c.l.b16 %v27
  %v58 = vunpack.c.l.b16 %v28
  %v59 = vunpack.c.l.b16 %v29
  %v60 = vunpack.c.l.b16 %v30
  %v61 = vunpack.c.l.b16 %v31
  %v62 = vunpack.c.l.b16 %v32
  %v63 = vpack.c.b16 %v58, %v57
  %v64 = vpack.c.b16 %v60, %v59
  %v65 = vpack.c.b16 %v62, %v61
  %vm69 = vcmask 392192
  %v71 = vsel %vm69, %v49, 0
  %v74 = vsel %vm69, %v50, 0
  %76 = vmatpush.bf16.msra.mxu0 0
  %77 = vmatpush.bf16.msra.mxu0 0
  %78 = vmatpush.bf16.msra.mxu0 0
  %79 = vmatpush.bf16.msra.mxu0 0
  %80 = vmatpush.bf16.msra.mxu0 0
  %81 = vmatpush.bf16.msra.mxu0 %v65
  %82 = vmatpush.bf16.msra.mxu0 %v64
  %83 = vmatpush.bf16.msra.mxu0 %v63
  %84 = vmatmul.bf16.gmra.mxu0 %v71
  %v85 = vpop.f32.mrf.mxu0
  %v86 = vadd.f32 %v39, %v85
  %v87 = vpop.f32.mrf.mxu0
  %v88 = vadd.f32 %v39, %v87
  %89 = vmatmul.bf16.gmra.mxu0 %v74
  %v90 = vpop.f32.mrf.mxu0
  %v91 = vadd.f32 %v39, %v90
  %v92 = vpop.f32.mrf.mxu0
  %v93 = vadd.f32 %v39, %v92
  %94 = vdwg.mxu0
  %v95 = vld [vmem:[%s1] sm:$0xf]
  %v96 = vld [vmem:[%s1 + $0x4] sm:$0xf]
  %v97 = vld [vmem:[%s1 + $0x8] sm:$0xf]
  %v98 = vld [vmem:[%s1 + $0xc] sm:$0xf]
  %v103 = vunpack.c.l.b16 %v95
  %v104 = vunpack.c.l.b16 %v96
  %v105 = vunpack.c.l.b16 %v97
  %v106 = vunpack.c.l.b16 %v98
  %v107 = vpack.c.b16 %v104, %v103
  %v108 = vpack.c.b16 %v106, %v105
  %v110 = vsel %vm69, %v107, 0
  %v113 = vsel %vm69, %v108, 0
  %115 = vmatpush.bf16.msra.mxu0 0
  %116 = vmatpush.bf16.msra.mxu0 0
  %117 = vmatpush.bf16.msra.mxu0 0
  %118 = vmatpush.bf16.msra.mxu0 0
  %119 = vmatpush.bf16.msra.mxu0 0
  %120 = vmatpush.bf16.msra.mxu0 %v65
  %121 = vmatpush.bf16.msra.mxu0 %v64
  %122 = vmatpush.bf16.msra.mxu0 %v63
  %123 = vmatmul.bf16.gmra.mxu0 %v110
  %v124 = vpop.f32.mrf.mxu0
  %v125 = vadd.f32 %v39, %v124
  %v126 = vpop.f32.mrf.mxu0
  %v127 = vadd.f32 %v39, %v126
  %128 = vmatmul.bf16.gmra.mxu0 %v113
  %v129 = vpop.f32.mrf.mxu0
  %v130 = vadd.f32 %v39, %v129
  %v131 = vpop.f32.mrf.mxu0
  %v132 = vadd.f32 %v39, %v131
  %133 = vdwg.mxu0
  %v134 = vmul.f32 %v86, 0.5
  %v135 = vmul.f32 %v88, 0.5
  %v136 = vmul.f32 %v91, 0.5
  %v137 = vmul.f32 %v93, 0.5
  %v138 = vmul.f32 %v86, 0.044715
  %v139 = vmul.f32 %v88, 0.044715
  %v140 = vmul.f32 %v91, 0.044715
  %v141 = vmul.f32 %v93, 0.044715
  %v142 = vmul.f32 %v138, %v86
  %v143 = vmul.f32 %v139, %v88
  %v144 = vmul.f32 %v140, %v91
  %v145 = vmul.f32 %v141, %v93
  %v146 = vmul.f32 %v142, %v86
  %v147 = vmul.f32 %v143, %v88
  %v148 = vmul.f32 %v144, %v91
  %v149 = vmul.f32 %v145, %v93
  %v150 = vadd.f32 %v86, %v146
  %v151 = vadd.f32 %v88, %v147
  %v152 = vadd.f32 %v91, %v148
  %v153 = vadd.f32 %v93, %v149
  %v154 = vmul.f32 %v150, 0.7978846
  %v155 = vmul.f32 %v151, 0.7978846
  %v156 = vmul.f32 %v152, 0.7978846
  %v157 = vmul.f32 %v153, 0.7978846
  %v158 = vtanh.pop %v154
  %v159 = vtanh.pop %v155
  %v160 = vtanh.pop %v156
  %v161 = vtanh.pop %v157
  %v162 = vadd.f32 %v158, 1.0
  %v163 = vadd.f32 %v159, 1.0
  %v164 = vadd.f32 %v160, 1.0
  %v165 = vadd.f32 %v161, 1.0
  %v166 = vmul.f32 %v134, %v162
  %v167 = vmul.f32 %v135, %v163
  %v168 = vmul.f32 %v136, %v164
  %v169 = vmul.f32 %v137, %v165
  %v170 = vmul.f32 %v125, 0.5
  %v171 = vmul.f32 %v127, 0.5
  %v172 = vmul.f32 %v130, 0.5
  %v173 = vmul.f32 %v132, 0.5
  %v174 = vmul.f32 %v125, 0.044715
  %v175 = vmul.f32 %v127, 0.044715
  %v176 = vmul.f32 %v130, 0.044715
  %v177 = vmul.f32 %v132, 0.044715
  %v178 = vmul.f32 %v174, %v125
  %v179 = vmul.f32 %v175, %v127
  %v180 = vmul.f32 %v176, %v130
  %v181 = vmul.f32 %v177, %v132
  %v182 = vmul.f32 %v178, %v125
  %v183 = vmul.f32 %v179, %v127
  %v184 = vmul.f32 %v180, %v130
  %v185 = vmul.f32 %v181, %v132
  %v186 = vadd.f32 %v125, %v182
  %v187 = vadd.f32 %v127, %v183
  %v188 = vadd.f32 %v130, %v184
  %v189 = vadd.f32 %v132, %v185
  %v190 = vmul.f32 %v186, 0.7978846
  %v191 = vmul.f32 %v187, 0.7978846
  %v192 = vmul.f32 %v188, 0.7978846
  %v193 = vmul.f32 %v189, 0.7978846
  %v194 = vtanh.pop %v190
  %v195 = vtanh.pop %v191
  %v196 = vtanh.pop %v192
  %v197 = vtanh.pop %v193
  %v198 = vadd.f32 %v194, 1.0
  %v199 = vadd.f32 %v195, 1.0
  %v200 = vadd.f32 %v196, 1.0
  %v201 = vadd.f32 %v197, 1.0
  %v202 = vmul.f32 %v170, %v198
  %v203 = vmul.f32 %v171, %v199
  %v204 = vmul.f32 %v172, %v200
  %v205 = vmul.f32 %v173, %v201
  %v206 = vsub.f32 %v166, %v202
  %v207 = vsub.f32 %v167, %v203
  %v208 = vsub.f32 %v168, %v204
  %v209 = vsub.f32 %v169, %v205
  %v210 = vmul.f32 %v206, %v206
  %v211 = vmul.f32 %v207, %v207
  %v212 = vmul.f32 %v208, %v208
  %v213 = vmul.f32 %v209, %v209
  %v214 = vadd.f32 %v210, %v211
  %v215 = vadd.f32 %v214, %v212
  %v216 = vadd.f32 %v215, %v213
  %v217 = vrot.slane %v216, 4
  %v218 = vadd.f32 %v216, %v217
  %v219 = vrot.slane %v218, 2
  %v220 = vadd.f32 %v218, %v219
  %v221 = vrot.slane %v220, 1
  %v222 = vadd.f32 %v220, %v221
  %223 = vst [vmem:[%s6] sm:$0x1] %v222
  %v224 = vpack.c.bf16 %v207, %v206
  %v225 = vpack.c.bf16 %v209, %v208
  %v226 = vld [vmem:[%s4] sm:$0xf]
  %v227 = vld [vmem:[%s4 + $0x4] sm:$0xf]
  %v228 = vld [vmem:[%s4 + $0x8] sm:$0xf]
  %v229 = vld [vmem:[%s4 + $0xc] sm:$0xf]
  %v230 = vld [vmem:[%s4 + $0x10] sm:$0xf]
  %v231 = vld [vmem:[%s4 + $0x14] sm:$0xf]
  %v232 = vld [vmem:[%s4 + $0x18] sm:$0xf]
  %v233 = vld [vmem:[%s4 + $0x1c] sm:$0xf]
  %v234 = vld [vmem:[%s4 + $0x20] sm:$0xf]
  %v235 = vld [vmem:[%s4 + $0x24] sm:$0xf]
  %v236 = vld [vmem:[%s4 + $0x28] sm:$0xf]
  %v237 = vld [vmem:[%s4 + $0x2c] sm:$0xf]
  %v238 = vld [vmem:[%s4 + $0x30] sm:$0xf]
  %v239 = vld [vmem:[%s4 + $0x34] sm:$0xf]
  %v240 = vld [vmem:[%s4 + $0x38] sm:$0xf]
  %v241 = vld [vmem:[%s4 + $0x3c] sm:$0xf]
  %v258 = vunpack.c.l.b16 %v226
  %v259 = vunpack.c.l.b16 %v227
  %v260 = vunpack.c.l.b16 %v228
  %v261 = vunpack.c.l.b16 %v229
  %v262 = vunpack.c.l.b16 %v230
  %v263 = vunpack.c.l.b16 %v231
  %v264 = vunpack.c.l.b16 %v232
  %v265 = vunpack.c.l.b16 %v233
  %v266 = vunpack.c.l.b16 %v234
  %v267 = vunpack.c.l.b16 %v235
  %v268 = vunpack.c.l.b16 %v236
  %v269 = vunpack.c.l.b16 %v237
  %v270 = vunpack.c.l.b16 %v238
  %v271 = vunpack.c.l.b16 %v239
  %v272 = vunpack.c.l.b16 %v240
  %v273 = vunpack.c.l.b16 %v241
  %v274 = vpack.c.b16 %v259, %v258
  %v275 = vpack.c.b16 %v261, %v260
  %v276 = vpack.c.b16 %v263, %v262
  %v277 = vpack.c.b16 %v265, %v264
  %v278 = vpack.c.b16 %v267, %v266
  %v279 = vpack.c.b16 %v269, %v268
  %v280 = vpack.c.b16 %v271, %v270
  %v281 = vpack.c.b16 %v273, %v272
  %290 = vmatpush.bf16.msra.mxu0 %v281
  %291 = vmatpush.bf16.msra.mxu0 %v280
  %292 = vmatpush.bf16.msra.mxu0 %v279
  %293 = vmatpush.bf16.msra.mxu0 %v278
  %294 = vmatpush.bf16.msra.mxu0 %v277
  %295 = vmatpush.bf16.msra.mxu0 %v276
  %296 = vmatpush.bf16.msra.mxu0 %v275
  %297 = vmatpush.bf16.msra.mxu0 %v274
  %298 = vmatmul.bf16.gmra.mxu0 %v224
  %v299 = vpop.f32.mrf.mxu0
  %v300 = vadd.f32 0.0, %v299
  %v301 = vpop.f32.mrf.mxu0
  %v302 = vadd.f32 0.0, %v301
  %303 = vmatmul.bf16.gmra.mxu0 %v225
  %v304 = vpop.f32.mrf.mxu0
  %v305 = vadd.f32 0.0, %v304
  %v306 = vpop.f32.mrf.mxu0
  %v307 = vadd.f32 0.0, %v306
  %308 = vdwg.mxu0
  %v309 = vmul.f32 %v300, %v300
  %v310 = vmul.f32 %v302, %v302
  %v311 = vmul.f32 %v305, %v305
  %v312 = vmul.f32 %v307, %v307
  %v313 = vadd.f32 %v309, %v310
  %v314 = vadd.f32 %v313, %v311
  %v315 = vadd.f32 %v314, %v312
  %v316 = vrot.slane %v315, 4
  %v317 = vadd.f32 %v315, %v316
  %v318 = vrot.slane %v317, 2
  %v319 = vadd.f32 %v317, %v318
  %v320 = vrot.slane %v319, 1
  %v321 = vadd.f32 %v319, %v320
  %322 = vst [vmem:[%s7] sm:$0x1] %v321
  %v323 = vpack.c.bf16 %v302, %v300
  %v324 = vpack.c.bf16 %v307, %v305
  %v325 = vld [vmem:[%s5] sm:$0xf]
  %v326 = vld [vmem:[%s5 + $0x4] sm:$0xf]
  %v327 = vld [vmem:[%s5 + $0x8] sm:$0xf]
  %v328 = vld [vmem:[%s5 + $0xc] sm:$0xf]
  %v329 = vld [vmem:[%s5 + $0x10] sm:$0xf]
  %v330 = vld [vmem:[%s5 + $0x14] sm:$0xf]
  %v331 = vld [vmem:[%s5 + $0x18] sm:$0xf]
  %v332 = vld [vmem:[%s5 + $0x1c] sm:$0xf]
  %v333 = vld [vmem:[%s5 + $0x20] sm:$0xf]
  %v334 = vld [vmem:[%s5 + $0x24] sm:$0xf]
  %v335 = vld [vmem:[%s5 + $0x28] sm:$0xf]
  %v336 = vld [vmem:[%s5 + $0x2c] sm:$0xf]
  %v337 = vld [vmem:[%s5 + $0x30] sm:$0xf]
  %v338 = vld [vmem:[%s5 + $0x34] sm:$0xf]
  %v339 = vld [vmem:[%s5 + $0x38] sm:$0xf]
  %v340 = vld [vmem:[%s5 + $0x3c] sm:$0xf]
  %v357 = vunpack.c.l.b16 %v325
  %v358 = vunpack.c.l.b16 %v326
  %v359 = vunpack.c.l.b16 %v327
  %v360 = vunpack.c.l.b16 %v328
  %v361 = vunpack.c.l.b16 %v329
  %v362 = vunpack.c.l.b16 %v330
  %v363 = vunpack.c.l.b16 %v331
  %v364 = vunpack.c.l.b16 %v332
  %v365 = vunpack.c.l.b16 %v333
  %v366 = vunpack.c.l.b16 %v334
  %v367 = vunpack.c.l.b16 %v335
  %v368 = vunpack.c.l.b16 %v336
  %v369 = vunpack.c.l.b16 %v337
  %v370 = vunpack.c.l.b16 %v338
  %v371 = vunpack.c.l.b16 %v339
  %v372 = vunpack.c.l.b16 %v340
  %v373 = vpack.c.b16 %v358, %v357
  %v374 = vpack.c.b16 %v360, %v359
  %v375 = vpack.c.b16 %v362, %v361
  %v376 = vpack.c.b16 %v364, %v363
  %v377 = vpack.c.b16 %v366, %v365
  %v378 = vpack.c.b16 %v368, %v367
  %v379 = vpack.c.b16 %v370, %v369
  %v380 = vpack.c.b16 %v372, %v371
  %389 = vmatpush.bf16.msra.mxu0 %v380
  %390 = vmatpush.bf16.msra.mxu0 %v379
  %391 = vmatpush.bf16.msra.mxu0 %v378
  %392 = vmatpush.bf16.msra.mxu0 %v377
  %393 = vmatpush.bf16.msra.mxu0 %v376
  %394 = vmatpush.bf16.msra.mxu0 %v375
  %395 = vmatpush.bf16.msra.mxu0 %v374
  %396 = vmatpush.bf16.msra.mxu0 %v373
  %397 = vmatmul.bf16.gmra.mxu0 %v323
  %v398 = vpop.f32.mrf.mxu0
  %v399 = vadd.f32 0.0, %v398
  %v400 = vpop.f32.mrf.mxu0
  %v401 = vadd.f32 0.0, %v400
  %402 = vmatmul.bf16.gmra.mxu0 %v324
  %v403 = vpop.f32.mrf.mxu0
  %v404 = vadd.f32 0.0, %v403
  %v405 = vpop.f32.mrf.mxu0
  %v406 = vadd.f32 0.0, %v405
  %407 = vdwg.mxu0
  %v408 = vmul.f32 %v399, %v399
  %v409 = vmul.f32 %v401, %v401
  %v410 = vmul.f32 %v404, %v404
  %v411 = vmul.f32 %v406, %v406
  %v412 = vadd.f32 %v408, %v409
  %v413 = vadd.f32 %v412, %v410
  %v414 = vadd.f32 %v413, %v411
  %v415 = vrot.slane %v414, 4
  %v416 = vadd.f32 %v414, %v415
  %v417 = vrot.slane %v416, 2
  %v418 = vadd.f32 %v416, %v417
  %v419 = vrot.slane %v418, 1
  %v420 = vadd.f32 %v418, %v419
  %421 = vst [vmem:[%s8] sm:$0x1] %v420
  // Predicated region
  $region26: #{sam_perceptual_loss.1} parent=0 // pred_check
    _
  $region27: #{sam_perceptual_loss.1} parent=0 // pred_check_branch
    %423 = sbr.rel (0) target = $region29
  $region28: #{sam_perceptual_loss.1} parent=0 // pred_region
    _
  $region29: #{sam_perceptual_loss.1} parent=0 // pred_fallthru
    _
  // Predicated region
  $region30: #{sam_perceptual_loss.1} parent=0 // pred_check
    _
  $region31: #{sam_perceptual_loss.1} parent=0 // pred_check_branch
    %425 = sbr.rel (0) target = $region33
  $region32: #{sam_perceptual_loss.1} parent=0 // pred_region
    _
  $region33: #{sam_perceptual_loss.1} parent=0 // pred_fallthru
    _
  // Predicated region
  $region34: #{sam_perceptual_loss.1} parent=0 // pred_check
    _
  $region35: #{sam_perceptual_loss.1} parent=0 // pred_check_branch
    %427 = sbr.rel (0) target = $region37
  $region36: #{sam_perceptual_loss.1} parent=0 // pred_region
    _
  $region37: #{sam_perceptual_loss.1} parent=0 // pred_fallthru
    _
  // Predicated region
  $region38: #{sam_perceptual_loss.1} parent=0 // pred_check
    _
  $region39: #{sam_perceptual_loss.1} parent=0 // pred_check_branch
    %429 = sbr.rel (0) target = $region41
  $region40: #{sam_perceptual_loss.1} parent=0 // pred_region
    _
  $region41: #{sam_perceptual_loss.1} parent=0 // pred_fallthru
    _
  // Predicated region
  $region42: #{sam_perceptual_loss.1} parent=0 // pred_check
    _
  $region43: #{sam_perceptual_loss.1} parent=0 // pred_check_branch
    %431 = sbr.rel (0) target = $region45
  $region44: #{sam_perceptual_loss.1} parent=0 // pred_region
    _
  $region45: #{sam_perceptual_loss.1} parent=0 // pred_fallthru
    _
  // Predicated region
  $region46: #{sam_perceptual_loss.1} parent=0 // pred_check
    _
  $region47: #{sam_perceptual_loss.1} parent=0 // pred_check_branch
    %433 = sbr.rel (0) target = $region49
  $region48: #{sam_perceptual_loss.1} parent=0 // pred_region
    _
  $region49: #{sam_perceptual_loss.1} parent=0 // pred_fallthru
    _

</llo_original>
